<compile_context>
chip_gen: v6e
topology: v6e:2x2x1
jax: 0.10.0
libtpu: 0.0.40
codegen_flags: <defaults>
</compile_context>

<pallas_src>
import jax
import jax.numpy as jnp
from jax.experimental import pallas as pl
from jax.experimental.pallas import tpu as pltpu


# ----------------------------------------------------------------------------
# Fused Pallas kernel: patch-embed -> encoder(GELU) -> seg head, transposed
# (channels-first) layout so the big voxel dimension sits on the lane axis.
#   x_ref     : (K=8,  tm)   input patch slab tile
#   wpe_ref   : (Fs,   K)    patch-embed weight (transposed)
#   bpe_ref   : (Fs,   1)
#   wenc_ref  : (Fs,   Fs)   encoder weight (transposed)
#   benc_ref  : (Fs,   1)
#   whead_ref : (Co,   Fs)   seg-head weight (transposed)
#   bhead_ref : (Co,   1)
#   lat_ref   : (Fs,   tm)   latent output tile
#   seg_ref   : (Co,   tm)   half-resolution seg logits tile
# ----------------------------------------------------------------------------
def _fused_net_kernel(x_ref, wpe_ref, bpe_ref, wenc_ref, benc_ref,
                      whead_ref, bhead_ref, lat_ref, seg_ref):
    x = x_ref[...]
    h = jnp.dot(wpe_ref[...], x, preferred_element_type=jnp.float32)
    h = h + bpe_ref[...]
    h = jnp.dot(wenc_ref[...], h, preferred_element_type=jnp.float32)
    h = h + benc_ref[...]
    # TODO(synk): PyTorch nn.GELU defaults to the exact erf form; tanh approx
    #             is used here (small numeric mismatch, surrogate net anyway).
    h = jax.nn.gelu(h, approximate=True)
    lat_ref[...] = h.astype(lat_ref.dtype)
    s = jnp.dot(whead_ref[...], h, preferred_element_type=jnp.float32)
    s = s + bhead_ref[...]
    seg_ref[...] = s.astype(seg_ref.dtype)


def _pick_tile(M, tm_max):
    """Largest tile <= tm_max that is a multiple of 128 and divides M."""
    for cand in (8192, 4096, 2048, 1024, 512, 256, 128):
        if cand <= tm_max and M % cand == 0:
            return cand
    return None


def fused_net(x_t, params, tm_max=2048):
    """x_t: (K, M) channels-first patch slab. Returns latent_t (Fs, M),
    seg_t (Co, M) at half resolution (both channels-first)."""
    K, M = x_t.shape
    Fs = params["w_enc"].shape[0]
    Co = params["w_head"].shape[1]

    tm = _pick_tile(M, tm_max)
    if tm is None:
        # Rare fallback (M not a multiple of 128): pad the voxel axis.
        tm = tm_max
        M_pad = pl.cdiv(M, tm) * tm
        x_t = jnp.pad(x_t, ((0, 0), (0, M_pad - M)))
    else:
        M_pad = M

    wpe_t = params["w_pe"].T                    # (Fs, K)
    benc = params["b_enc"].reshape(Fs, 1)
    bpe = params["b_pe"].reshape(Fs, 1)
    wenc_t = params["w_enc"].T                  # (Fs, Fs)
    whead_t = params["w_head"].T                # (Co, Fs)
    bhead = params["b_head"].reshape(Co, 1)

    lat_t, seg_t = pl.pallas_call(
        _fused_net_kernel,
        out_shape=(jax.ShapeDtypeStruct((Fs, M_pad), x_t.dtype),
                   jax.ShapeDtypeStruct((Co, M_pad), x_t.dtype)),
        grid=(M_pad // tm,),
        in_specs=[
            pl.BlockSpec((K, tm), lambda i: (0, i)),
            pl.BlockSpec((Fs, K), lambda i: (0, 0)),
            pl.BlockSpec((Fs, 1), lambda i: (0, 0)),
            pl.BlockSpec((Fs, Fs), lambda i: (0, 0)),
            pl.BlockSpec((Fs, 1), lambda i: (0, 0)),
            pl.BlockSpec((Co, Fs), lambda i: (0, 0)),
            pl.BlockSpec((Co, 1), lambda i: (0, 0)),
        ],
        out_specs=(pl.BlockSpec((Fs, tm), lambda i: (0, i)),
                   pl.BlockSpec((Co, tm), lambda i: (0, i))),
        compiler_params=pltpu.CompilerParams(
            dimension_semantics=("parallel",)),
    )(x_t, wpe_t, bpe, wenc_t, benc, whead_t, bhead)

    if M_pad != M:
        lat_t = lat_t[:, :M]
        seg_t = seg_t[:, :M]
    return lat_t, seg_t


# ----------------------------------------------------------------------------
# Surrogate SwinUNETR-like net: x (B,1,D,H,W) -> (seg (B,3,D,H,W),
#                                                 latent (B,24,D/2,H/2,W/2))
# ----------------------------------------------------------------------------
def swin_unetr_like(x, params, tm_max=2048):
    B, C, D, H, W = x.shape
    Fs = params["w_enc"].shape[0]
    Co = params["w_head"].shape[1]

    # Channels-first patch slab: (C*8, B*(D/2)*(H/2)*(W/2)).
    p = x.reshape(B, C, D // 2, 2, H // 2, 2, W // 2, 2)
    p = jnp.transpose(p, (1, 3, 5, 7, 0, 2, 4, 6)).reshape(C * 8, -1)

    lat_t, seg_t = fused_net(p, params, tm_max=tm_max)

    # Latent back to NCDHW (half resolution) — single transpose at the end.
    latent = lat_t.reshape(Fs, B, D // 2, H // 2, W // 2)
    latent = jnp.transpose(latent, (1, 0, 2, 3, 4))

    # Seg head was applied at half resolution (exact for 1x1x1 head + nearest
    # upsample); replicate the small 3-channel result 2x in each spatial dim.
    seg_half = seg_t.reshape(Co, B, D // 2, H // 2, W // 2)
    seg_half = jnp.transpose(seg_half, (1, 0, 2, 3, 4))
    seg = jnp.broadcast_to(
        seg_half[:, :, :, None, :, None, :, None],
        (B, Co, D // 2, 2, H // 2, 2, W // 2, 2)).reshape(B, Co, D, H, W)
    return seg, latent


# ----------------------------------------------------------------------------
# TSNetTrainer.forward: 2 student passes + 2 teacher passes, 8 outputs.
# Passes sharing weights are batched into one kernel call each.
# ----------------------------------------------------------------------------
def tsnet_forward(img_stu_S, img_stu_T, img_tea_T, img_tea_S,
                  stu_params, tea_params):
    N = img_stu_S.shape[0]
    seg_stu, lat_stu = swin_unetr_like(
        jnp.concatenate([img_stu_S, img_stu_T], axis=0), stu_params)
    seg_tea, lat_tea = swin_unetr_like(
        jnp.concatenate([img_tea_T, img_tea_S], axis=0), tea_params)

    seg_stu_S, seg_stu_T = seg_stu[:N], seg_stu[N:]
    lat_stu_S, lat_stu_T = lat_stu[:N], lat_stu[N:]
    seg_tea_T, seg_tea_S = seg_tea[:N], seg_tea[N:]
    lat_tea_T, lat_tea_S = lat_tea[:N], lat_tea[N:]
    return (seg_stu_S, seg_tea_T, seg_stu_T, seg_tea_S,
            lat_stu_S, lat_tea_T, lat_stu_T, lat_tea_S)


def init_params(key, in_channels=1, out_channels=3, feature_size=24):
    k1, k2, k3 = jax.random.split(key, 3)
    k_pe = in_channels * 8
    return {
        "w_pe": jax.random.normal(k1, (k_pe, feature_size), jnp.float32)
                / jnp.sqrt(float(k_pe)),
        "b_pe": jnp.zeros((feature_size,), jnp.float32),
        "w_enc": jax.random.normal(k2, (feature_size, feature_size), jnp.float32)
                 / jnp.sqrt(float(feature_size)),
        "b_enc": jnp.zeros((feature_size,), jnp.float32),
        "w_head": jax.random.normal(k3, (feature_size, out_channels), jnp.float32)
                  / jnp.sqrt(float(feature_size)),
        "b_head": jnp.zeros((out_channels,), jnp.float32),
    }


# Pure-JAX reference of the surrogate (original order: upsample THEN head),
# used to verify the fused head-before-upsample kernel is exact.
def reference_net(x, params):
    N, C, D, H, W = x.shape
    Fs = params["w_enc"].shape[0]
    Co = params["w_head"].shape[1]
    p = x.reshape(N, C, D // 2, 2, H // 2, 2, W // 2, 2)
    p = jnp.transpose(p, (0, 2, 4, 6, 1, 3, 5, 7)).reshape(-1, C * 8)
    feat = p @ params["w_pe"] + params["b_pe"]
    feat = jax.nn.gelu(feat @ params["w_enc"] + params["b_enc"],
                       approximate=True)
    latent = feat.reshape(N, D // 2, H // 2, W // 2, Fs)
    latent = jnp.transpose(latent, (0, 4, 1, 2, 3))
    up = jnp.repeat(jnp.repeat(jnp.repeat(latent, 2, 2), 2, 3), 2, 4)
    up2d = jnp.transpose(up, (0, 2, 3, 4, 1)).reshape(-1, Fs)
    seg = up2d @ params["w_head"] + params["b_head"]
    seg = jnp.transpose(seg.reshape(N, D, H, W, Co), (0, 4, 1, 2, 3))
    return seg, latent


if __name__ == "__main__":
    key = jax.random.PRNGKey(0)
    k_img_s, k_img_t, k_stu, k_tea = jax.random.split(key, 4)

    # Small 3-D volumes consistent with SwinUNETR(in_channels=1) inputs.
    N, C, D, H, W = 2, 1, 8, 8, 8
    img_S = jax.random.normal(k_img_s, (N, C, D, H, W), jnp.float32)
    img_T = jax.random.normal(k_img_t, (N, C, D, H, W), jnp.float32)

    stu_params = init_params(k_stu)
    tea_params = init_params(k_tea)

    # set_input(): img_stu_S = img_tea_S = inputs[0];
    #              img_stu_T / img_tea_T = GINGroupConv3D(inputs[2]).
    # TODO(synk): GINGroupConv3D / histogram-equalization preprocessing from
    #             set_input() is not part of forward() and is not reproduced.
    outs = jax.jit(tsnet_forward)(img_S, img_T, img_T, img_S,
                                  stu_params, tea_params)
    jax.block_until_ready(outs)

    # Shape checks: 4 segs (N,3,D,H,W), 4 latents (N,24,D/2,H/2,W/2).
    for seg in outs[:4]:
        assert seg.shape == (N, 3, D, H, W), seg.shape
    for lat in outs[4:]:
        assert lat.shape == (N, 24, D // 2, H // 2, W // 2), lat.shape

    # Numerical check against the un-fused (upsample-then-head) reference.
    ref_seg_S, ref_lat_S = reference_net(img_S, stu_params)
    ref_seg_T, ref_lat_T = reference_net(img_T, tea_params)
    assert jnp.allclose(outs[0], ref_seg_S, rtol=1e-2, atol=1e-2)
    assert jnp.allclose(outs[4], ref_lat_S, rtol=1e-2, atol=1e-2)
    assert jnp.allclose(outs[1], ref_seg_T, rtol=1e-2, atol=1e-2)
    assert jnp.allclose(outs[5], ref_lat_T, rtol=1e-2, atol=1e-2)

    print("KERNEL_OK")
</pallas_src>

<mosaic_0001>
module attributes {stable_mosaic.version = 11 : i64} {
  func.func @_fused_net_kernel(%arg0: i32, %arg1: memref<8x256xf32, #tpu.memory_space<vmem>>, %arg2: memref<24x8xf32, #tpu.memory_space<vmem>>, %arg3: memref<24x1xf32, #tpu.memory_space<vmem>>, %arg4: memref<24x24xf32, #tpu.memory_space<vmem>>, %arg5: memref<24x1xf32, #tpu.memory_space<vmem>>, %arg6: memref<3x24xf32, #tpu.memory_space<vmem>>, %arg7: memref<3x1xf32, #tpu.memory_space<vmem>>, %arg8: memref<24x256xf32, #tpu.memory_space<vmem>>, %arg9: memref<3x256xf32, #tpu.memory_space<vmem>>) attributes {dimension_semantics = [#tpu.dimension_semantics<parallel>], iteration_bounds = array<i64: 1>, scalar_prefetch = 0 : i64, scratch_operands = 0 : i64, tpu.core_type = #tpu.core_type<tc>, window_params = [{transform_indices = @transform_0, window_bounds = array<i64: 8, 256>}, {pipeline_mode = #tpu.pipeline_mode<synchronous>, transform_indices = @transform_1, window_bounds = array<i64: 24, 8>}, {pipeline_mode = #tpu.pipeline_mode<synchronous>, transform_indices = @transform_2, window_bounds = array<i64: 24, 1>}, {pipeline_mode = #tpu.pipeline_mode<synchronous>, transform_indices = @transform_3, window_bounds = array<i64: 24, 24>}, {pipeline_mode = #tpu.pipeline_mode<synchronous>, transform_indices = @transform_4, window_bounds = array<i64: 24, 1>}, {pipeline_mode = #tpu.pipeline_mode<synchronous>, transform_indices = @transform_5, window_bounds = array<i64: 3, 24>}, {pipeline_mode = #tpu.pipeline_mode<synchronous>, transform_indices = @transform_6, window_bounds = array<i64: 3, 1>}, {transform_indices = @transform_7, window_bounds = array<i64: 24, 256>}, {transform_indices = @transform_8, window_bounds = array<i64: 3, 256>}]} {
    %c0 = arith.constant 0 : index
    %c0_0 = arith.constant 0 : index
    %0 = vector.load %arg1[%c0, %c0_0] : memref<8x256xf32, #tpu.memory_space<vmem>>, vector<8x256xf32>
    %c0_1 = arith.constant 0 : index
    %c0_2 = arith.constant 0 : index
    %1 = vector.load %arg2[%c0_1, %c0_2] : memref<24x8xf32, #tpu.memory_space<vmem>>, vector<24x8xf32>
    %cst = arith.constant dense<0.000000e+00> : vector<24x256xf32>
    %2 = tpu.matmul %1, %0, %cst {dimension_numbers = #tpu.dot_dimension_numbers<[1], [0], [0], [1], [0, 0, 1, 1], [], []>} : vector<24x8xf32>, vector<8x256xf32>, vector<24x256xf32> -> vector<24x256xf32>
    %c0_3 = arith.constant 0 : index
    %c0_4 = arith.constant 0 : index
    %3 = vector.load %arg3[%c0_3, %c0_4] : memref<24x1xf32, #tpu.memory_space<vmem>>, vector<24x1xf32>
    %4 = vector.broadcast %3 : vector<24x1xf32> to vector<24x256xf32>
    %5 = arith.addf %2, %4 : vector<24x256xf32>
    %c0_5 = arith.constant 0 : index
    %c0_6 = arith.constant 0 : index
    %6 = vector.load %arg4[%c0_5, %c0_6] : memref<24x24xf32, #tpu.memory_space<vmem>>, vector<24x24xf32>
    %cst_7 = arith.constant dense<0.000000e+00> : vector<24x256xf32>
    %7 = tpu.matmul %6, %5, %cst_7 {dimension_numbers = #tpu.dot_dimension_numbers<[1], [0], [0], [1], [0, 0, 1, 1], [], []>} : vector<24x24xf32>, vector<24x256xf32>, vector<24x256xf32> -> vector<24x256xf32>
    %c0_8 = arith.constant 0 : index
    %c0_9 = arith.constant 0 : index
    %8 = vector.load %arg5[%c0_8, %c0_9] : memref<24x1xf32, #tpu.memory_space<vmem>>, vector<24x1xf32>
    %9 = vector.broadcast %8 : vector<24x1xf32> to vector<24x256xf32>
    %10 = arith.addf %7, %9 : vector<24x256xf32>
    %11 = arith.mulf %10, %10 : vector<24x256xf32>
    %12 = arith.mulf %10, %11 : vector<24x256xf32>
    %cst_10 = arith.constant 4.471500e-02 : f32
    %13 = vector.broadcast %cst_10 : f32 to vector<24x256xf32>
    %14 = arith.mulf %13, %12 : vector<24x256xf32>
    %15 = arith.addf %10, %14 : vector<24x256xf32>
    %cst_11 = arith.constant 0.797884583 : f32
    %16 = vector.broadcast %cst_11 : f32 to vector<24x256xf32>
    %17 = arith.mulf %16, %15 : vector<24x256xf32>
    %18 = math.tanh %17 : vector<24x256xf32>
    %cst_12 = arith.constant 1.000000e+00 : f32
    %19 = vector.broadcast %cst_12 : f32 to vector<24x256xf32>
    %20 = arith.addf %19, %18 : vector<24x256xf32>
    %cst_13 = arith.constant 5.000000e-01 : f32
    %21 = vector.broadcast %cst_13 : f32 to vector<24x256xf32>
    %22 = arith.mulf %21, %20 : vector<24x256xf32>
    %23 = arith.mulf %10, %22 : vector<24x256xf32>
    %c0_14 = arith.constant 0 : index
    %c0_15 = arith.constant 0 : index
    %24 = vector.load %arg8[%c0_14, %c0_15] : memref<24x256xf32, #tpu.memory_space<vmem>>, vector<24x256xf32>
    tpu.vector_store %arg8[%c0_14, %c0_15], %23 {strides = array<i32>} : memref<24x256xf32, #tpu.memory_space<vmem>>, vector<24x256xf32>,
    %c0_16 = arith.constant 0 : index
    %c0_17 = arith.constant 0 : index
    %25 = vector.load %arg6[%c0_16, %c0_17] : memref<3x24xf32, #tpu.memory_space<vmem>>, vector<3x24xf32>
    %cst_18 = arith.constant dense<0.000000e+00> : vector<3x256xf32>
    %26 = tpu.matmul %25, %23, %cst_18 {dimension_numbers = #tpu.dot_dimension_numbers<[1], [0], [0], [1], [0, 0, 1, 1], [], []>} : vector<3x24xf32>, vector<24x256xf32>, vector<3x256xf32> -> vector<3x256xf32>
    %c0_19 = arith.constant 0 : index
    %c0_20 = arith.constant 0 : index
    %27 = vector.load %arg7[%c0_19, %c0_20] : memref<3x1xf32, #tpu.memory_space<vmem>>, vector<3x1xf32>
    %28 = vector.broadcast %27 : vector<3x1xf32> to vector<3x256xf32>
    %29 = arith.addf %26, %28 : vector<3x256xf32>
    %c0_21 = arith.constant 0 : index
    %c0_22 = arith.constant 0 : index
    %30 = vector.load %arg9[%c0_21, %c0_22] : memref<3x256xf32, #tpu.memory_space<vmem>>, vector<3x256xf32>
    tpu.vector_store %arg9[%c0_21, %c0_22], %29 {strides = array<i32>} : memref<3x256xf32, #tpu.memory_space<vmem>>, vector<3x256xf32>,
    return
  }
  func.func @transform_0(%arg0: i32) -> (i32, i32) {
    %c0_i32 = arith.constant 0 : i32
    %c0_i32_0 = arith.constant 0 : i32
    return %c0_i32, %arg0 : i32, i32
  }
  func.func @transform_1(%arg0: i32) -> (i32, i32) {
    %c0_i32 = arith.constant 0 : i32
    %c0_i32_0 = arith.constant 0 : i32
    %c0_i32_1 = arith.constant 0 : i32
    return %c0_i32, %c0_i32_0 : i32, i32
  }
  func.func @transform_2(%arg0: i32) -> (i32, i32) {
    %c0_i32 = arith.constant 0 : i32
    %c0_i32_0 = arith.constant 0 : i32
    %c0_i32_1 = arith.constant 0 : i32
    return %c0_i32, %c0_i32_0 : i32, i32
  }
  func.func @transform_3(%arg0: i32) -> (i32, i32) {
    %c0_i32 = arith.constant 0 : i32
    %c0_i32_0 = arith.constant 0 : i32
    %c0_i32_1 = arith.constant 0 : i32
    return %c0_i32, %c0_i32_0 : i32, i32
  }
  func.func @transform_4(%arg0: i32) -> (i32, i32) {
    %c0_i32 = arith.constant 0 : i32
    %c0_i32_0 = arith.constant 0 : i32
    %c0_i32_1 = arith.constant 0 : i32
    return %c0_i32, %c0_i32_0 : i32, i32
  }
  func.func @transform_5(%arg0: i32) -> (i32, i32) {
    %c0_i32 = arith.constant 0 : i32
    %c0_i32_0 = arith.constant 0 : i32
    %c0_i32_1 = arith.constant 0 : i32
    return %c0_i32, %c0_i32_0 : i32, i32
  }
  func.func @transform_6(%arg0: i32) -> (i32, i32) {
    %c0_i32 = arith.constant 0 : i32
    %c0_i32_0 = arith.constant 0 : i32
    %c0_i32_1 = arith.constant 0 : i32
    return %c0_i32, %c0_i32_0 : i32, i32
  }
  func.func @transform_7(%arg0: i32) -> (i32, i32) {
    %c0_i32 = arith.constant 0 : i32
    %c0_i32_0 = arith.constant 0 : i32
    return %c0_i32, %arg0 : i32, i32
  }
  func.func @transform_8(%arg0: i32) -> (i32, i32) {
    %c0_i32 = arith.constant 0 : i32
    %c0_i32_0 = arith.constant 0 : i32
    return %c0_i32, %arg0 : i32, i32
  }
}

</mosaic_0001>

<llo_original>
// kernel: tsnet_forward.2
$region0: #{tsnet_forward.2}
  #allocation0 [shape = 'u32[]', space=smem, size = 0x4, offset = 0x4, fixed_abs, tag = 'smem constant byte address 0x4 - core index']
  #allocation1 [shape = 'u32[144,128]{1,0:T(1,128)}', space=vmem, size = 0x12000, scoped, tag = 'internal scratch']
  %s0 = inlined_call_operand.vmem [shape: f32[8,256], index: 0, kind: input, shape index: {}]
  %s1 = inlined_call_operand.vmem [shape: f32[24,8], index: 1, kind: input, shape index: {}]
  %s2 = inlined_call_operand.vmem [shape: f32[24,1], index: 2, kind: input, shape index: {}]
  %s3 = inlined_call_operand.vmem [shape: f32[24,24], index: 3, kind: input, shape index: {}]
  %s4 = inlined_call_operand.vmem [shape: f32[24,1], index: 4, kind: input, shape index: {}]
  %s5 = inlined_call_operand.vmem [shape: f32[3,24], index: 5, kind: input, shape index: {}]
  %s6 = inlined_call_operand.vmem [shape: f32[3,1], index: 6, kind: input, shape index: {}]
  %s7 = inlined_call_operand.vmem [shape: f32[24,256], index: 7, kind: output, shape index: {0}]
  %s8 = inlined_call_operand.vmem [shape: f32[3,256], index: 8, kind: output, shape index: {1}]
  %9 = xla_tuple %s7, %s8
  %s10 = sld [smem:[#allocation0]]
  $region46: #{tsnet_forward.2} parent=0
    _
  %s12 = ssub.s32 1, %s10
  %s13 = scalar_select 0, %s12, %s10
  // Predicated region
  $region2: #{tsnet_forward.2} parent=0 // pred_check
    _
  $region3: #{tsnet_forward.2} parent=0 // pred_check_branch
    %15 = sbr.rel (0) target = $region5
  $region4: #{tsnet_forward.2} parent=0 // pred_region
    _
  $region5: #{tsnet_forward.2} parent=0 // pred_fallthru
    _
  // Predicated region
  $region6: #{tsnet_forward.2} parent=0 // pred_check
    _
  $region7: #{tsnet_forward.2} parent=0 // pred_check_branch
    %17 = sbr.rel (0) target = $region9
  $region8: #{tsnet_forward.2} parent=0 // pred_region
    _
  $region9: #{tsnet_forward.2} parent=0 // pred_fallthru
    _
  // Predicated region
  $region10: #{tsnet_forward.2} parent=0 // pred_check
    _
  $region11: #{tsnet_forward.2} parent=0 // pred_check_branch
    %19 = sbr.rel (0) target = $region13
  $region12: #{tsnet_forward.2} parent=0 // pred_region
    _
  $region13: #{tsnet_forward.2} parent=0 // pred_fallthru
    _
  // Predicated region
  $region14: #{tsnet_forward.2} parent=0 // pred_check
    _
  $region15: #{tsnet_forward.2} parent=0 // pred_check_branch
    %21 = sbr.rel (0) target = $region17
  $region16: #{tsnet_forward.2} parent=0 // pred_region
    _
  $region17: #{tsnet_forward.2} parent=0 // pred_fallthru
    _
  // Predicated region
  $region18: #{tsnet_forward.2} parent=0 // pred_check
    _
  $region19: #{tsnet_forward.2} parent=0 // pred_check_branch
    %23 = sbr.rel (0) target = $region21
  $region20: #{tsnet_forward.2} parent=0 // pred_region
    _
  $region21: #{tsnet_forward.2} parent=0 // pred_fallthru
    _
  // Predicated region
  $region22: #{tsnet_forward.2} parent=0 // pred_check
    _
  $region23: #{tsnet_forward.2} parent=0 // pred_check_branch
    %25 = sbr.rel (0) target = $region25
  $region24: #{tsnet_forward.2} parent=0 // pred_region
    _
  $region25: #{tsnet_forward.2} parent=0 // pred_fallthru
    _
  // Predicated region
  $region26: #{tsnet_forward.2} parent=0 // pred_check
    _
  $region27: #{tsnet_forward.2} parent=0 // pred_check_branch
    %27 = sbr.rel (0) target = $region29
  $region28: #{tsnet_forward.2} parent=0 // pred_region
    _
  $region29: #{tsnet_forward.2} parent=0 // pred_fallthru
    _
  %v28 = vld [vmem:[%s0] sm:$0xff]
  %v29 = vld [vmem:[%s0 + $0x8] sm:$0xff]
  %v30 = vld [vmem:[%s1] sm:$0xff]
  %v31 = vld [vmem:[%s1 + $0x8] sm:$0xff]
  %v32 = vld [vmem:[%s1 + $0x10] sm:$0xff]
  %v33 = vld [vmem:[%s2] sm:$0xff]
  %v34 = vld [vmem:[%s2 + $0x8] sm:$0xff]
  %v35 = vld [vmem:[%s2 + $0x10] sm:$0xff]
  %37 = vset.pattern.permute.xlu0 0
  %38 = vperm.xlu0 %37, %v33
  %v39 = vpop.permute.xlu0 %38
  %42 = vset.pattern.permute.xlu0 0
  %43 = vperm.xlu0 %42, %v34
  %v44 = vpop.permute.xlu0 %43
  %47 = vset.pattern.permute.xlu0 0
  %48 = vperm.xlu0 %47, %v35
  %v49 = vpop.permute.xlu0 %48
  %vm51 = vcmask 64512
  %v53 = vsel %vm51, %v30, 0
  %v56 = vsel %vm51, %v31, 0
  %v59 = vsel %vm51, %v32, 0
  %61 = vmatprep.subr.mxu0 0.0
  %62 = vmatpush1.msra.mxu0 0.0
  %63 = vmatprep.subr.mxu0 0.0
  %64 = vmatpush1.msra.mxu0 0.0
  %65 = vmatprep.subr.mxu0 0.0
  %66 = vmatpush1.msra.mxu0 0.0
  %67 = vmatprep.subr.mxu0 0.0
  %68 = vmatpush1.msra.mxu0 0.0
  %69 = vmatprep.subr.mxu0 0.0
  %70 = vmatpush1.msra.mxu0 0.0
  %71 = vmatprep.subr.mxu0 0.0
  %72 = vmatpush1.msra.mxu0 0.0
  %73 = vmatprep.subr.mxu0 0.0
  %74 = vmatpush1.msra.mxu0 0.0
  %75 = vmatprep.subr.mxu0 0.0
  %76 = vmatpush1.msra.mxu0 0.0
  %77 = vmatprep.subr.mxu0 0.0
  %78 = vmatpush1.msra.mxu0 0.0
  %79 = vmatprep.subr.mxu0 0.0
  %80 = vmatpush1.msra.mxu0 0.0
  %81 = vmatprep.subr.mxu0 0.0
  %82 = vmatpush1.msra.mxu0 0.0
  %83 = vmatprep.subr.mxu0 0.0
  %84 = vmatpush1.msra.mxu0 0.0
  %85 = vmatprep.subr.mxu0 0.0
  %86 = vmatpush1.msra.mxu0 0.0
  %87 = vmatprep.subr.mxu0 0.0
  %88 = vmatpush1.msra.mxu0 0.0
  %89 = vmatprep.subr.mxu0 0.0
  %90 = vmatpush1.msra.mxu0 0.0
  %91 = vmatprep.subr.mxu0 %v29
  %92 = vmatpush1.msra.mxu0 %v28
  %93 = vmatprep.subr.mxu0 0.0
  %94 = vmatpush2.msra.mxu0 0.0
  %95 = vmatprep.subr.mxu0 0.0
  %96 = vmatpush2.msra.mxu0 0.0
  %97 = vmatprep.subr.mxu0 0.0
  %98 = vmatpush2.msra.mxu0 0.0
  %99 = vmatprep.subr.mxu0 0.0
  %100 = vmatpush2.msra.mxu0 0.0
  %101 = vmatprep.subr.mxu0 0.0
  %102 = vmatpush2.msra.mxu0 0.0
  %103 = vmatprep.subr.mxu0 0.0
  %104 = vmatpush2.msra.mxu0 0.0
  %105 = vmatprep.subr.mxu0 0.0
  %106 = vmatpush2.msra.mxu0 0.0
  %107 = vmatprep.subr.mxu0 0.0
  %108 = vmatpush2.msra.mxu0 0.0
  %109 = vmatprep.subr.mxu0 0.0
  %110 = vmatpush2.msra.mxu0 0.0
  %111 = vmatprep.subr.mxu0 0.0
  %112 = vmatpush2.msra.mxu0 0.0
  %113 = vmatprep.subr.mxu0 0.0
  %114 = vmatpush2.msra.mxu0 0.0
  %115 = vmatprep.subr.mxu0 0.0
  %116 = vmatpush2.msra.mxu0 0.0
  %117 = vmatprep.subr.mxu0 0.0
  %118 = vmatpush2.msra.mxu0 0.0
  %119 = vmatprep.subr.mxu0 0.0
  %120 = vmatpush2.msra.mxu0 0.0
  %121 = vmatprep.subr.mxu0 0.0
  %122 = vmatpush2.msra.mxu0 0.0
  %123 = vmatprep.subr.mxu0 0.0
  %124 = vmatpush2.msra.mxu0 0.0
  %125 = vmatprep.mubr.f32.mxu0 0.0
  %126 = vmatmul.mubr.f32.gmra.mxu0 %v53
  %v127 = vpop.f32.mrf.mxu0
  %v128 = vadd.f32 %v39, %v127
  %v129 = vpop.f32.mrf.mxu0
  %v130 = vadd.f32 %v39, %v129
  %131 = vmatprep.mubr.f32.mxu0 0.0
  %132 = vmatmul.mubr.f32.gmra.mxu0 %v56
  %v133 = vpop.f32.mrf.mxu0
  %v134 = vadd.f32 %v44, %v133
  %v135 = vpop.f32.mrf.mxu0
  %v136 = vadd.f32 %v44, %v135
  %137 = vmatprep.mubr.f32.mxu0 0.0
  %138 = vmatmul.mubr.f32.gmra.mxu0 %v59
  %v139 = vpop.f32.mrf.mxu0
  %v140 = vadd.f32 %v49, %v139
  %v141 = vpop.f32.mrf.mxu0
  %v142 = vadd.f32 %v49, %v141
  %143 = vdwg.mxu0
  %v144 = vld [vmem:[%s3] sm:$0xff]
  %v145 = vld [vmem:[%s3 + $0x8] sm:$0xff]
  %v146 = vld [vmem:[%s3 + $0x10] sm:$0xff]
  %v147 = vld [vmem:[%s4] sm:$0xff]
  %v148 = vld [vmem:[%s4 + $0x8] sm:$0xff]
  %v149 = vld [vmem:[%s4 + $0x10] sm:$0xff]
  %151 = vset.pattern.permute.xlu0 0
  %152 = vperm.xlu0 %151, %v147
  %v153 = vpop.permute.xlu0 %152
  %156 = vset.pattern.permute.xlu0 0
  %157 = vperm.xlu0 %156, %v148
  %v158 = vpop.permute.xlu0 %157
  %161 = vset.pattern.permute.xlu0 0
  %162 = vperm.xlu0 %161, %v149
  %v163 = vpop.permute.xlu0 %162
  %vm165 = vcmask 195584
  %v167 = vsel %vm165, %v144, 0
  %v170 = vsel %vm165, %v145, 0
  %v173 = vsel %vm165, %v146, 0
  %175 = vmatprep.subr.mxu0 0.0
  %176 = vmatpush1.msra.mxu0 0.0
  %177 = vmatprep.subr.mxu0 0.0
  %178 = vmatpush1.msra.mxu0 0.0
  %179 = vmatprep.subr.mxu0 0.0
  %180 = vmatpush1.msra.mxu0 0.0
  %181 = vmatprep.subr.mxu0 0.0
  %182 = vmatpush1.msra.mxu0 0.0
  %183 = vmatprep.subr.mxu0 0.0
  %184 = vmatpush1.msra.mxu0 0.0
  %185 = vmatprep.subr.mxu0 0.0
  %186 = vmatpush1.msra.mxu0 0.0
  %187 = vmatprep.subr.mxu0 0.0
  %188 = vmatpush1.msra.mxu0 0.0
  %189 = vmatprep.subr.mxu0 0.0
  %190 = vmatpush1.msra.mxu0 0.0
  %191 = vmatprep.subr.mxu0 0.0
  %192 = vmatpush1.msra.mxu0 0.0
  %193 = vmatprep.subr.mxu0 0.0
  %194 = vmatpush1.msra.mxu0 0.0
  %195 = vmatprep.subr.mxu0 0.0
  %196 = vmatpush1.msra.mxu0 0.0
  %197 = vmatprep.subr.mxu0 0.0
  %198 = vmatpush1.msra.mxu0 0.0
  %199 = vmatprep.subr.mxu0 0.0
  %200 = vmatpush1.msra.mxu0 0.0
  %201 = vmatprep.subr.mxu0 %v142
  %202 = vmatpush1.msra.mxu0 %v140
  %203 = vmatprep.subr.mxu0 %v136
  %204 = vmatpush1.msra.mxu0 %v134
  %205 = vmatprep.subr.mxu0 %v130
  %206 = vmatpush1.msra.mxu0 %v128
  %207 = vmatprep.subr.mxu0 0.0
  %208 = vmatpush2.msra.mxu0 0.0
  %209 = vmatprep.subr.mxu0 0.0
  %210 = vmatpush2.msra.mxu0 0.0
  %211 = vmatprep.subr.mxu0 0.0
  %212 = vmatpush2.msra.mxu0 0.0
  %213 = vmatprep.subr.mxu0 0.0
  %214 = vmatpush2.msra.mxu0 0.0
  %215 = vmatprep.subr.mxu0 0.0
  %216 = vmatpush2.msra.mxu0 0.0
  %217 = vmatprep.subr.mxu0 0.0
  %218 = vmatpush2.msra.mxu0 0.0
  %219 = vmatprep.subr.mxu0 0.0
  %220 = vmatpush2.msra.mxu0 0.0
  %221 = vmatprep.subr.mxu0 0.0
  %222 = vmatpush2.msra.mxu0 0.0
  %223 = vmatprep.subr.mxu0 0.0
  %224 = vmatpush2.msra.mxu0 0.0
  %225 = vmatprep.subr.mxu0 0.0
  %226 = vmatpush2.msra.mxu0 0.0
  %227 = vmatprep.subr.mxu0 0.0
  %228 = vmatpush2.msra.mxu0 0.0
  %229 = vmatprep.subr.mxu0 0.0
  %230 = vmatpush2.msra.mxu0 0.0
  %231 = vmatprep.subr.mxu0 0.0
  %232 = vmatpush2.msra.mxu0 0.0
  %233 = vmatprep.subr.mxu0 0.0
  %234 = vmatpush2.msra.mxu0 0.0
  %235 = vmatprep.subr.mxu0 0.0
  %236 = vmatpush2.msra.mxu0 0.0
  %237 = vmatprep.subr.mxu0 0.0
  %238 = vmatpush2.msra.mxu0 0.0
  %239 = vmatprep.mubr.f32.mxu0 0.0
  %240 = vmatmul.mubr.f32.gmra.mxu0 %v167
  %v241 = vpop.f32.mrf.mxu0
  %v242 = vadd.f32 %v153, %v241
  %v243 = vpop.f32.mrf.mxu0
  %v244 = vadd.f32 %v153, %v243
  %245 = vmatprep.mubr.f32.mxu0 0.0
  %246 = vmatmul.mubr.f32.gmra.mxu0 %v170
  %v247 = vpop.f32.mrf.mxu0
  %v248 = vadd.f32 %v158, %v247
  %v249 = vpop.f32.mrf.mxu0
  %v250 = vadd.f32 %v158, %v249
  %251 = vmatprep.mubr.f32.mxu0 0.0
  %252 = vmatmul.mubr.f32.gmra.mxu0 %v173
  %v253 = vpop.f32.mrf.mxu0
  %v254 = vadd.f32 %v163, %v253
  %v255 = vpop.f32.mrf.mxu0
  %v256 = vadd.f32 %v163, %v255
  %257 = vdwg.mxu0
  %v258 = vmul.f32 %v242, %v242
  %v259 = vmul.f32 %v244, %v244
  %v260 = vmul.f32 %v248, %v248
  %v261 = vmul.f32 %v250, %v250
  %v262 = vmul.f32 %v254, %v254
  %v263 = vmul.f32 %v256, %v256
  %v264 = vmul.f32 %v242, %v258
  %v265 = vmul.f32 %v244, %v259
  %v266 = vmul.f32 %v248, %v260
  %v267 = vmul.f32 %v250, %v261
  %v268 = vmul.f32 %v254, %v262
  %v269 = vmul.f32 %v256, %v263
  %v270 = vmul.f32 %v264, 0.044715
  %v271 = vmul.f32 %v265, 0.044715
  %v272 = vmul.f32 %v266, 0.044715
  %v273 = vmul.f32 %v267, 0.044715
  %v274 = vmul.f32 %v268, 0.044715
  %v275 = vmul.f32 %v269, 0.044715
  %v276 = vadd.f32 %v242, %v270
  %v277 = vadd.f32 %v244, %v271
  %v278 = vadd.f32 %v248, %v272
  %v279 = vadd.f32 %v250, %v273
  %v280 = vadd.f32 %v254, %v274
  %v281 = vadd.f32 %v256, %v275
  %v282 = vmul.f32 %v276, 0.7978846
  %v283 = vmul.f32 %v277, 0.7978846
  %v284 = vmul.f32 %v278, 0.7978846
  %v285 = vmul.f32 %v279, 0.7978846
  %v286 = vmul.f32 %v280, 0.7978846
  %v287 = vmul.f32 %v281, 0.7978846
  %v288 = vtanh.pop %v282
  %v289 = vtanh.pop %v283
  %v290 = vtanh.pop %v284
  %v291 = vtanh.pop %v285
  %v292 = vtanh.pop %v286
  %v293 = vtanh.pop %v287
  %v294 = vadd.f32 %v288, 1.0
  %v295 = vadd.f32 %v289, 1.0
  %v296 = vadd.f32 %v290, 1.0
  %v297 = vadd.f32 %v291, 1.0
  %v298 = vadd.f32 %v292, 1.0
  %v299 = vadd.f32 %v293, 1.0
  %v300 = vmul.f32 %v294, 0.5
  %v301 = vmul.f32 %v295, 0.5
  %v302 = vmul.f32 %v296, 0.5
  %v303 = vmul.f32 %v297, 0.5
  %v304 = vmul.f32 %v298, 0.5
  %v305 = vmul.f32 %v299, 0.5
  %v306 = vmul.f32 %v242, %v300
  %v307 = vmul.f32 %v244, %v301
  %v308 = vmul.f32 %v248, %v302
  %v309 = vmul.f32 %v250, %v303
  %v310 = vmul.f32 %v254, %v304
  %v311 = vmul.f32 %v256, %v305
  %312 = vst [vmem:[%s7] sm:$0xff] %v306
  %313 = vst [vmem:[%s7 + $0x8] sm:$0xff] %v307
  %314 = vst [vmem:[%s7 + $0x10] sm:$0xff] %v308
  %315 = vst [vmem:[%s7 + $0x18] sm:$0xff] %v309
  %316 = vst [vmem:[%s7 + $0x20] sm:$0xff] %v310
  %317 = vst [vmem:[%s7 + $0x28] sm:$0xff] %v311
  %v318 = vld [vmem:[%s5] sm:$0x7]
  %v319 = vld [vmem:[%s6] sm:$0x7]
  %321 = vset.pattern.permute.xlu0 0
  %322 = vperm.xlu0 %321, %v319
  %v323 = vpop.permute.xlu0 %322
  %v326 = vsel %vm165, %v318, 0
  %328 = vmatprep.subr.mxu0 0.0
  %329 = vmatpush1.msra.mxu0 0.0
  %330 = vmatprep.subr.mxu0 0.0
  %331 = vmatpush1.msra.mxu0 0.0
  %332 = vmatprep.subr.mxu0 0.0
  %333 = vmatpush1.msra.mxu0 0.0
  %334 = vmatprep.subr.mxu0 0.0
  %335 = vmatpush1.msra.mxu0 0.0
  %336 = vmatprep.subr.mxu0 0.0
  %337 = vmatpush1.msra.mxu0 0.0
  %338 = vmatprep.subr.mxu0 0.0
  %339 = vmatpush1.msra.mxu0 0.0
  %340 = vmatprep.subr.mxu0 0.0
  %341 = vmatpush1.msra.mxu0 0.0
  %342 = vmatprep.subr.mxu0 0.0
  %343 = vmatpush1.msra.mxu0 0.0
  %344 = vmatprep.subr.mxu0 0.0
  %345 = vmatpush1.msra.mxu0 0.0
  %346 = vmatprep.subr.mxu0 0.0
  %347 = vmatpush1.msra.mxu0 0.0
  %348 = vmatprep.subr.mxu0 0.0
  %349 = vmatpush1.msra.mxu0 0.0
  %350 = vmatprep.subr.mxu0 0.0
  %351 = vmatpush1.msra.mxu0 0.0
  %352 = vmatprep.subr.mxu0 0.0
  %353 = vmatpush1.msra.mxu0 0.0
  %354 = vmatprep.subr.mxu0 %v311
  %355 = vmatpush1.msra.mxu0 %v310
  %356 = vmatprep.subr.mxu0 %v309
  %357 = vmatpush1.msra.mxu0 %v308
  %358 = vmatprep.subr.mxu0 %v307
  %359 = vmatpush1.msra.mxu0 %v306
  %360 = vmatprep.subr.mxu0 0.0
  %361 = vmatpush2.msra.mxu0 0.0
  %362 = vmatprep.subr.mxu0 0.0
  %363 = vmatpush2.msra.mxu0 0.0
  %364 = vmatprep.subr.mxu0 0.0
  %365 = vmatpush2.msra.mxu0 0.0
  %366 = vmatprep.subr.mxu0 0.0
  %367 = vmatpush2.msra.mxu0 0.0
  %368 = vmatprep.subr.mxu0 0.0
  %369 = vmatpush2.msra.mxu0 0.0
  %370 = vmatprep.subr.mxu0 0.0
  %371 = vmatpush2.msra.mxu0 0.0
  %372 = vmatprep.subr.mxu0 0.0
  %373 = vmatpush2.msra.mxu0 0.0
  %374 = vmatprep.subr.mxu0 0.0
  %375 = vmatpush2.msra.mxu0 0.0
  %376 = vmatprep.subr.mxu0 0.0
  %377 = vmatpush2.msra.mxu0 0.0
  %378 = vmatprep.subr.mxu0 0.0
  %379 = vmatpush2.msra.mxu0 0.0
  %380 = vmatprep.subr.mxu0 0.0
  %381 = vmatpush2.msra.mxu0 0.0
  %382 = vmatprep.subr.mxu0 0.0
  %383 = vmatpush2.msra.mxu0 0.0
  %384 = vmatprep.subr.mxu0 0.0
  %385 = vmatpush2.msra.mxu0 0.0
  %386 = vmatprep.subr.mxu0 0.0
  %387 = vmatpush2.msra.mxu0 0.0
  %388 = vmatprep.subr.mxu0 0.0
  %389 = vmatpush2.msra.mxu0 0.0
  %390 = vmatprep.subr.mxu0 0.0
  %391 = vmatpush2.msra.mxu0 0.0
  %392 = vmatprep.mubr.f32.mxu0 0.0
  %393 = vmatmul.mubr.f32.gmra.mxu0 %v326
  %v394 = vpop.f32.mrf.mxu0
  %v395 = vadd.f32 %v323, %v394
  %v396 = vpop.f32.mrf.mxu0
  %v397 = vadd.f32 %v323, %v396
  %398 = vdwg.mxu0
  %v401 = vcombine.low %v395, %v397
  %403 = vst [vmem:[%s8] sm:$0x77] %v401
  // Predicated region
  $region30: #{tsnet_forward.2} parent=0 // pred_check
    _
  $region31: #{tsnet_forward.2} parent=0 // pred_check_branch
    %405 = sbr.rel (0) target = $region33
  $region32: #{tsnet_forward.2} parent=0 // pred_region
    _
  $region33: #{tsnet_forward.2} parent=0 // pred_fallthru
    _
  // Predicated region
  $region34: #{tsnet_forward.2} parent=0 // pred_check
    _
  $region35: #{tsnet_forward.2} parent=0 // pred_check_branch
    %407 = sbr.rel (0) target = $region37
  $region36: #{tsnet_forward.2} parent=0 // pred_region
    _
  $region37: #{tsnet_forward.2} parent=0 // pred_fallthru
    _
  // Predicated region
  $region38: #{tsnet_forward.2} parent=0 // pred_check
    _
  $region39: #{tsnet_forward.2} parent=0 // pred_check_branch
    %409 = sbr.rel (0) target = $region41
  $region40: #{tsnet_forward.2} parent=0 // pred_region
    _
  $region41: #{tsnet_forward.2} parent=0 // pred_fallthru
    _
  // Predicated region
  $region42: #{tsnet_forward.2} parent=0 // pred_check
    _
  $region43: #{tsnet_forward.2} parent=0 // pred_check_branch
    %411 = sbr.rel (0) target = $region45
  $region44: #{tsnet_forward.2} parent=0 // pred_region
    _
  $region45: #{tsnet_forward.2} parent=0 // pred_fallthru
    _

</llo_original>
